<compile_context>
chip_gen: v7x
topology: tpu7x:2x2x1
jax: 0.10.0
libtpu: 0.0.40
codegen_flags: <defaults>
</compile_context>

<pallas_src>
import jax
import jax.numpy as jnp
from jax.experimental import pallas as pl
from jax.experimental.pallas import tpu as pltpu


def _make_prompt_kernel(n_ctx: int):
    def kernel(prefix_ref, ctx_ref, suffix_ref, out_ref):
        # prefix_ref : (C, 1, D)           per-class SOS embeddings
        # ctx_ref    : (n_ctx, D)          shared learnable context (resident)
        # suffix_ref : (C, S, D)           per-class name + EOS embeddings
        # out_ref    : (C, 1 + n_ctx + S, D)
        c, _, d = prefix_ref.shape
        out_dtype = out_ref.dtype

        prefix = prefix_ref[...].astype(out_dtype)                       # (C, 1, D)
        suffix = suffix_ref[...].astype(out_dtype)                       # (C, S, D)
        ctx_b = jnp.broadcast_to(
            ctx_ref[...][None, :, :], (c, n_ctx, d)).astype(out_dtype)   # (C, n_ctx, D)

        # Assemble the whole per-step slab and do a single lane-dense store
        # (no masked partial stores at token offsets 1 and 1 + n_ctx).
        out_ref[...] = jnp.concatenate([prefix, ctx_b, suffix], axis=1)

    return kernel


def _choose_class_block(n_cls, n_ctx, suffix_len, ctx_dim, itemsize,
                        vmem_budget_bytes=16 * 1024 * 1024, max_block=64):
    """Pick how many classes to process per grid step."""
    seq_len = 1 + n_ctx + suffix_len
    # Per-class bytes resident in VMEM per step: prefix + suffix in, out slab.
    per_class = (1 + suffix_len + seq_len) * ctx_dim * itemsize
    # Factor 2 accounts for double-buffered pipelining of the tiles.
    c = max(1, vmem_budget_bytes // (2 * per_class))
    c = int(min(c, max_block, n_cls))
    # Keep >= 2 grid steps when possible so the "parallel" class axis can be
    # sharded across v7x's two TensorCores (harmless on v5e/v6e).
    if n_cls > 1:
        c = min(c, pl.cdiv(n_cls, 2))
    return max(1, c)


def prompt_learner_forward(ctx, token_prefix, token_suffix, class_block=None):
    """Pallas implementation of PromptLearner.forward().

    ctx:          (n_ctx, ctx_dim)             learnable context
    token_prefix: (n_cls, 1, ctx_dim)          frozen SOS embeddings
    token_suffix: (n_cls, suffix_len, ctx_dim) frozen class-name/EOS embeddings
    returns:      (n_cls, 1 + n_ctx + suffix_len, ctx_dim) in the embedding dtype
    """
    n_ctx, ctx_dim = ctx.shape
    n_cls = token_prefix.shape[0]
    suffix_len = token_suffix.shape[1]
    seq_len = 1 + n_ctx + suffix_len
    # Output dtype follows the frozen CLIP embeddings; ctx is cast on store.
    out_dtype = token_prefix.dtype

    if class_block is None:
        class_block = _choose_class_block(
            n_cls, n_ctx, suffix_len, ctx_dim, jnp.dtype(out_dtype).itemsize)
    c = int(class_block)
    grid = (pl.cdiv(n_cls, c),)

    # TODO(synk): for a handful of classes a standalone pallas_call cannot beat
    # XLA's fused concatenate+broadcast; keep a plain-JAX fallback in the
    # consumer if that tiny-n_cls regime matters.

    kernel = _make_prompt_kernel(n_ctx)

    return pl.pallas_call(
        kernel,
        out_shape=jax.ShapeDtypeStruct((n_cls, seq_len, ctx_dim), out_dtype),
        grid_spec=pltpu.PrefetchScalarGridSpec(
            num_scalar_prefetch=0,
            grid=grid,
            in_specs=[
                # C classes' prefix rows per grid step.
                pl.BlockSpec((c, 1, ctx_dim), lambda i: (i, 0, 0)),
                # Shared ctx: constant block index -> DMA'd once, stays resident.
                pl.BlockSpec((n_ctx, ctx_dim), lambda i: (0, 0)),
                # C classes' suffix rows per grid step.
                pl.BlockSpec((c, suffix_len, ctx_dim), lambda i: (i, 0, 0)),
            ],
            out_specs=pl.BlockSpec((c, seq_len, ctx_dim), lambda i: (i, 0, 0)),
        ),
        compiler_params=pltpu.CompilerParams(
            dimension_semantics=("parallel",),
            # Explicit ceiling: safe on v5e/v6e (128 MiB phys) and v7x (64 MiB).
            vmem_limit_bytes=32 * 1024 * 1024,
        ),
    )(token_prefix, ctx, token_suffix)


if __name__ == "__main__":
    # Small shapes consistent with the module:
    #   n_cls classes, n_ctx learnable context tokens, ctx_dim embedding width,
    #   total prompt length L = 1 (SOS) + n_ctx + suffix_len.
    n_cls = 16
    n_ctx = 8
    ctx_dim = 128
    suffix_len = 7          # class-name tokens + EOS + padding embeddings
    dtype = jnp.float32

    key = jax.random.PRNGKey(0)
    k_ctx, k_pre, k_suf = jax.random.split(key, 3)

    # ctx_vectors ~ N(0, 0.02) as in nn.init.normal_(std=0.02)
    ctx = (0.02 * jax.random.normal(k_ctx, (n_ctx, ctx_dim))).astype(dtype)
    # token_prefix / token_suffix stand in for frozen CLIP token embeddings
    token_prefix = jax.random.normal(k_pre, (n_cls, 1, ctx_dim)).astype(dtype)
    token_suffix = jax.random.normal(k_suf, (n_cls, suffix_len, ctx_dim)).astype(dtype)

    prompts = prompt_learner_forward(ctx, token_prefix, token_suffix)
    prompts = jax.block_until_ready(prompts)

    # Reference (plain JAX) check of the forward semantics.
    ctx_b = jnp.broadcast_to(ctx[None, :, :], (n_cls, n_ctx, ctx_dim))
    ref = jnp.concatenate([token_prefix, ctx_b, token_suffix], axis=1)
    assert prompts.shape == (n_cls, 1 + n_ctx + suffix_len, ctx_dim)
    assert prompts.dtype == ref.dtype
    assert jnp.array_equal(prompts, ref)

    print("KERNEL_OK")
</pallas_src>

<mosaic_0001>
module attributes {stable_mosaic.version = 11 : i64} {
  func.func @kernel(%arg0: i32, %arg1: memref<8x1x128xf32, #tpu.memory_space<vmem>>, %arg2: memref<8x128xf32, #tpu.memory_space<vmem>>, %arg3: memref<8x7x128xf32, #tpu.memory_space<vmem>>, %arg4: memref<8x16x128xf32, #tpu.memory_space<vmem>>) attributes {dimension_semantics = [#tpu.dimension_semantics<parallel>], iteration_bounds = array<i64: 2>, scalar_prefetch = 0 : i64, scratch_operands = 0 : i64, tpu.core_type = #tpu.core_type<tc>, window_params = [{transform_indices = @transform_0, window_bounds = array<i64: 8, 1, 128>}, {pipeline_mode = #tpu.pipeline_mode<synchronous>, transform_indices = @transform_1, window_bounds = array<i64: 8, 128>}, {transform_indices = @transform_2, window_bounds = array<i64: 8, 7, 128>}, {transform_indices = @transform_3, window_bounds = array<i64: 8, 16, 128>}]} {
    %c0 = arith.constant 0 : index
    %c0_0 = arith.constant 0 : index
    %c0_1 = arith.constant 0 : index
    %0 = vector.load %arg1[%c0, %c0_0, %c0_1] : memref<8x1x128xf32, #tpu.memory_space<vmem>>, vector<8x1x128xf32>
    %c0_2 = arith.constant 0 : index
    %c0_3 = arith.constant 0 : index
    %c0_4 = arith.constant 0 : index
    %1 = vector.load %arg3[%c0_2, %c0_3, %c0_4] : memref<8x7x128xf32, #tpu.memory_space<vmem>>, vector<8x7x128xf32>
    %c0_5 = arith.constant 0 : index
    %c0_6 = arith.constant 0 : index
    %2 = vector.load %arg2[%c0_5, %c0_6] : memref<8x128xf32, #tpu.memory_space<vmem>>, vector<8x128xf32>
    %3 = vector.shape_cast %2 : vector<8x128xf32> to vector<1x8x128xf32>
    %4 = vector.shape_cast %3 : vector<1x8x128xf32> to vector<1x8x128xf32>
    %5 = vector.broadcast %4 : vector<1x8x128xf32> to vector<8x8x128xf32>
    %6 = tpu.concatenate %0, %5, %1 in 1 : vector<8x1x128xf32>, vector<8x8x128xf32>, vector<8x7x128xf32> -> vector<8x16x128xf32>
    %c0_7 = arith.constant 0 : index
    %c0_8 = arith.constant 0 : index
    %c0_9 = arith.constant 0 : index
    %7 = vector.load %arg4[%c0_7, %c0_8, %c0_9] : memref<8x16x128xf32, #tpu.memory_space<vmem>>, vector<8x16x128xf32>
    tpu.vector_store %arg4[%c0_7, %c0_8, %c0_9], %6 {strides = array<i32>} : memref<8x16x128xf32, #tpu.memory_space<vmem>>, vector<8x16x128xf32>,
    return
  }
  func.func @transform_0(%arg0: i32) -> (i32, i32, i32) {
    %c0_i32 = arith.constant 0 : i32
    %c0_i32_0 = arith.constant 0 : i32
    %c0_i32_1 = arith.constant 0 : i32
    return %arg0, %c0_i32, %c0_i32_0 : i32, i32, i32
  }
  func.func @transform_1(%arg0: i32) -> (i32, i32) {
    %c0_i32 = arith.constant 0 : i32
    %c0_i32_0 = arith.constant 0 : i32
    %c0_i32_1 = arith.constant 0 : i32
    return %c0_i32, %c0_i32_0 : i32, i32
  }
  func.func @transform_2(%arg0: i32) -> (i32, i32, i32) {
    %c0_i32 = arith.constant 0 : i32
    %c0_i32_0 = arith.constant 0 : i32
    %c0_i32_1 = arith.constant 0 : i32
    return %arg0, %c0_i32, %c0_i32_0 : i32, i32, i32
  }
  func.func @transform_3(%arg0: i32) -> (i32, i32, i32) {
    %c0_i32 = arith.constant 0 : i32
    %c0_i32_0 = arith.constant 0 : i32
    %c0_i32_1 = arith.constant 0 : i32
    return %arg0, %c0_i32, %c0_i32_0 : i32, i32, i32
  }
}

</mosaic_0001>

<llo_original>
// kernel: tpu_custom_call.1
$region0: #{tpu_custom_call.1}
  #allocation0 [shape = 'u32[]', space=smem, size = 0x4, offset = 0x4, fixed_abs, tag = 'smem constant byte address 0x4 - core index']
  #allocation1 [shape = 'u32[144,128]{1,0:T(1,128)}', space=vmem, size = 0x12000, scoped, tag = 'internal scratch']
  %s0 = inlined_call_operand.vmem [shape: f32[16,1,128], index: 0, kind: input, shape index: {}]
  %s1 = inlined_call_operand.vmem [shape: f32[8,128], index: 1, kind: input, shape index: {}]
  %s2 = inlined_call_operand.vmem [shape: f32[16,7,128], index: 2, kind: input, shape index: {}]
  %s3 = inlined_call_operand.hbm [shape: f32[16,16,128], index: 3, kind: output, shape index: {}]
  %s4 = sld [smem:[#allocation0]]
  $region45: #{tpu_custom_call.1} parent=0
    _
  %s6 = ssub.s32 1, %s4
  %s7 = scalar_select 0, %s6, %s4
  $region1: #{tpu_custom_call.1} parent=0
    #allocation2 [shape = 'u8[131072]{0}', space=vmem, size = 0x20000, scoped, tag = 'output window, operand 0']
    #allocation3 [shape = 's32[2]{0}', space=sflag, size = 0x8, scoped, tag = 'scoped memory for tpu_custom_call.1']
    %8 = vsyncpa [#allocation3], 0
    %s9 = scalar_lea.sflag [#allocation3], 1
    %10 = vsyncpa %s9, 0
    loop: start=0, step=1, limit=4
    $region2: #{tpu_custom_call.1} parent=1 // loop_pre_header
      _
    $region3: #{tpu_custom_call.1} parent=1 // loop_header
      %s12 = sphi 0, %s16
      %p13 = scmp.ge.s32.totalorder %s12, 4
      %s22 = sphi 0, %s24
      %s25 = sphi 0, %s22
      %s26 = sphi 0, %s25
      %s42 = sphi 0, %s26
      %s46 = sphi 0, %s46
      %s48 = sphi 0, %s46
      %s49 = sphi 0, %s48
      %s63 = sphi 0, %s49
      %s69 = sphi 0, %s71
      %s72 = sphi 0, %s69
      %s73 = sphi 0, %s72
      %s89 = sphi 0, %s73
      %s95 = sphi 0, %s97
      %s98 = sphi 0, %s95
      %s99 = sphi 0, %s98
      %s115 = sphi 0, %s99
    $region4: #{tpu_custom_call.1} parent=1 // loop_header_branch
      %15 = sbr.rel (%p13) target = $region8
    $region5: #{tpu_custom_call.1} parent=1 // loop_body
      %s17 = ssub.s32 %s12, 1
      %s18 = ssub.s32 %s12, 2
      %s19 = sadd.s32 %s12, 1
      %s20 = ssub.s32 %s12, %s19
      %p21 = scmp.eq.s32.totalorder %s20, 0
      %s23 = sadd.s32 %s22, 1
      %s24 = scalar_select %p21, %s22, %s23
      %p27 = pneg %p21
      %p28 = scmp.eq.s32.totalorder %s12, 1
      %p29 = por %p27, %p28
      %p30 = scmp.ne.s32.totalorder %s22, %s25
      %p31 = scmp.eq.s32.totalorder %s12, 0
      %p32 = por %p30, %p31
      %p33 = scmp.ne.s32.totalorder %s22, %s25
      %p34 = scmp.eq.s32.totalorder %s17, 1
      %p35 = por %p33, %p34
      %p36 = scmp.ne.s32.totalorder %s25, %s26
      %p37 = scmp.eq.s32.totalorder %s17, 0
      %p38 = por %p36, %p37
      %p39 = scmp.ne.s32.totalorder %s25, %s26
      %p40 = scmp.eq.s32.totalorder %s18, 1
      %p41 = por %p39, %p40
      %p43 = scmp.ne.s32.totalorder %s26, %s42
      %p44 = scmp.eq.s32.totalorder %s18, 0
      %p45 = por %p43, %p44
      %s47 = sadd.s32 %s46, 1
      %p50 = scmp.eq.s32.totalorder %s12, 1
      %p51 = scmp.ne.s32.totalorder %s46, %s48
      %p52 = scmp.eq.s32.totalorder %s12, 0
      %p53 = por %p51, %p52
      %p54 = scmp.ne.s32.totalorder %s46, %s48
      %p55 = scmp.eq.s32.totalorder %s17, 1
      %p56 = por %p54, %p55
      %p57 = scmp.ne.s32.totalorder %s48, %s49
      %p58 = scmp.eq.s32.totalorder %s17, 0
      %p59 = por %p57, %p58
      %p60 = scmp.ne.s32.totalorder %s48, %s49
      %p61 = scmp.eq.s32.totalorder %s18, 1
      %p62 = por %p60, %p61
      %p64 = scmp.ne.s32.totalorder %s49, %s63
      %p65 = scmp.eq.s32.totalorder %s18, 0
      %p66 = por %p64, %p65
      %s67 = ssub.s32 %s12, %s19
      %p68 = scmp.eq.s32.totalorder %s67, 0
      %s70 = sadd.s32 %s69, 1
      %s71 = scalar_select %p68, %s69, %s70
      %p74 = pneg %p68
      %p75 = scmp.eq.s32.totalorder %s12, 1
      %p76 = por %p74, %p75
      %p77 = scmp.ne.s32.totalorder %s69, %s72
      %p78 = scmp.eq.s32.totalorder %s12, 0
      %p79 = por %p77, %p78
      %p80 = scmp.ne.s32.totalorder %s69, %s72
      %p81 = scmp.eq.s32.totalorder %s17, 1
      %p82 = por %p80, %p81
      %p83 = scmp.ne.s32.totalorder %s72, %s73
      %p84 = scmp.eq.s32.totalorder %s17, 0
      %p85 = por %p83, %p84
      %p86 = scmp.ne.s32.totalorder %s72, %s73
      %p87 = scmp.eq.s32.totalorder %s18, 1
      %p88 = por %p86, %p87
      %p90 = scmp.ne.s32.totalorder %s73, %s89
      %p91 = scmp.eq.s32.totalorder %s18, 0
      %p92 = por %p90, %p91
      %s93 = ssub.s32 %s12, %s19
      %p94 = scmp.eq.s32.totalorder %s93, 0
      %s96 = sadd.s32 %s95, 1
      %s97 = scalar_select %p94, %s95, %s96
      %p100 = pneg %p94
      %p101 = scmp.eq.s32.totalorder %s12, 1
      %p102 = por %p100, %p101
      %p103 = scmp.ne.s32.totalorder %s95, %s98
      %p104 = scmp.eq.s32.totalorder %s12, 0
      %p105 = por %p103, %p104
      %p106 = scmp.ne.s32.totalorder %s95, %s98
      %p107 = scmp.eq.s32.totalorder %s17, 1
      %p108 = por %p106, %p107
      %p109 = scmp.ne.s32.totalorder %s98, %s99
      %p110 = scmp.eq.s32.totalorder %s17, 0
      %p111 = por %p109, %p110
      %p112 = scmp.ne.s32.totalorder %s98, %s99
      %p113 = scmp.eq.s32.totalorder %s18, 1
      %p114 = por %p112, %p113
      %p116 = scmp.ne.s32.totalorder %s99, %s115
      %p117 = scmp.eq.s32.totalorder %s18, 0
      %p118 = por %p116, %p117
      %p119 = scmp.le.s32.totalorder 1, %s12
      %p120 = scmp.lt.s32.totalorder %s12, 3
      %p121 = pnand %p119, %p120
      %p122 = pneg %p121
      // Predicated region
      $region9: #{tpu_custom_call.1} parent=5 // pred_check
        _
      $region10: #{tpu_custom_call.1} parent=5 // pred_check_branch
        %124 = sbr.rel (%p121) target = $region12
      $region11: #{tpu_custom_call.1} parent=5 // pred_region
        %s125 = ssub.s32 %s12, 1
        // Predicated region
        $region13: #{tpu_custom_call.1} parent=11 // pred_check
          %p126 = pneg %p59
        $region14: #{tpu_custom_call.1} parent=11 // pred_check_branch
          %128 = sbr.rel (%p126) target = $region16
        $region15: #{tpu_custom_call.1} parent=11 // pred_region
          _
        $region16: #{tpu_custom_call.1} parent=11 // pred_fallthru
          _
      $region12: #{tpu_custom_call.1} parent=5 // pred_fallthru
        _
      %p129 = scmp.lt.s32.totalorder %s12, 2
      // Predicated region
      $region17: #{tpu_custom_call.1} parent=5 // pred_check
        %p130 = pneg %p129
      $region18: #{tpu_custom_call.1} parent=5 // pred_check_branch
        %132 = sbr.rel (%p130) target = $region20
      $region19: #{tpu_custom_call.1} parent=5 // pred_region
        // Predicated region
        $region21: #{tpu_custom_call.1} parent=19 // pred_check
          %p133 = pneg %p32
        $region22: #{tpu_custom_call.1} parent=19 // pred_check_branch
          %135 = sbr.rel (%p133) target = $region24
        $region23: #{tpu_custom_call.1} parent=19 // pred_region
          %s136 = smul.u32 8, %s12
          %p137 = scmp.lt.s32.totalorder %s136, 15
          %s138 = scalar_select %p137, %s136, 15
          %s139 = scalar_lea.vmem %s0, %s138
          %s140 = smul.u32 8, %s12
        $region24: #{tpu_custom_call.1} parent=19 // pred_fallthru
          _
        // Predicated region
        $region25: #{tpu_custom_call.1} parent=19 // pred_check
          %p141 = pneg %p79
        $region26: #{tpu_custom_call.1} parent=19 // pred_check_branch
          %143 = sbr.rel (%p141) target = $region28
        $region27: #{tpu_custom_call.1} parent=19 // pred_region
          %s144 = smul.u32 8, %s12
          %p145 = scmp.lt.s32.totalorder %s144, 15
          %s146 = scalar_select %p145, %s144, 15
          %s147 = smul.addr %s146, 8
          %s148 = scalar_lea.vmem %s2, %s147
          %s149 = smul.u32 8, %s12
        $region28: #{tpu_custom_call.1} parent=19 // pred_fallthru
          _
      $region20: #{tpu_custom_call.1} parent=5 // pred_fallthru
        _
      %p150 = scmp.le.s32.totalorder 1, %s12
      %p151 = scmp.lt.s32.totalorder %s12, 3
      %p152 = pnand %p150, %p151
      %p153 = pneg %p152
      // Predicated region
      $region29: #{tpu_custom_call.1} parent=5 // pred_check
        _
      $region30: #{tpu_custom_call.1} parent=5 // pred_check_branch
        %155 = sbr.rel (%p152) target = $region32
      $region31: #{tpu_custom_call.1} parent=5 // pred_region
        %s156 = ssub.s32 %s12, 1
        %s157 = smul.u32 8, %s17
        %p158 = scmp.lt.s32.totalorder %s157, 15
        %s159 = scalar_select %p158, %s157, 15
        %s160 = scalar_lea.vmem %s0, %s159
        %p161 = pneg %p38
        %p162 = pneg %p35
        %p163 = pneg %p59
        %p164 = pneg %p56
        %s165 = smul.u32 8, %s17
        %p166 = scmp.lt.s32.totalorder %s165, 15
        %s167 = scalar_select %p166, %s165, 15
        %s168 = smul.addr %s167, 8
        %s169 = scalar_lea.vmem %s2, %s168
        %p170 = pneg %p85
        %p171 = pneg %p82
        %p172 = pneg %p111
        %p173 = pneg %p108
        %s174 = sand.u32 %s98, 1
        %s175 = scalar_lea.sflag [#allocation3], %s174
        %s176 = sand.u32 %s98, 1
        %s177 = smul.addr %s176, 128
        %s178 = scalar_lea.vmem [#allocation2], %s177
        %s179 = smul.u32 8, %s17
        %p180 = scmp.lt.s32.totalorder %s179, 15
        %s181 = scalar_select %p180, %s179, 15
        %s182 = scalar_lea.vmem %s0, %s181
        %s183 = smul.u32 8, %s17
        %s184 = smul.u32 8, %s17
        %p185 = scmp.lt.s32.totalorder %s184, 15
        %s186 = scalar_select %p185, %s184, 15
        %s187 = smul.addr %s186, 8
        %s188 = scalar_lea.vmem %s2, %s187
        %s189 = smul.u32 8, %s17
        %s190 = smul.u32 8, %s17
        %v191 = vld [vmem:[%s182] sm:$0x1]
        %v192 = vld [vmem:[%s182 + $0x1] sm:$0x1]
        %v193 = vld [vmem:[%s182 + $0x2] sm:$0x1]
        %v194 = vld [vmem:[%s182 + $0x3] sm:$0x1]
        %v195 = vld [vmem:[%s182 + $0x4] sm:$0x1]
        %v196 = vld [vmem:[%s182 + $0x5] sm:$0x1]
        %v197 = vld [vmem:[%s182 + $0x6] sm:$0x1]
        %v198 = vld [vmem:[%s182 + $0x7] sm:$0x1]
        %v199 = vld [vmem:[%s188] sm:$0x7f]
        %v200 = vld [vmem:[%s188 + $0x8] sm:$0x7f]
        %v201 = vld [vmem:[%s188 + $0x10] sm:$0x7f]
        %v202 = vld [vmem:[%s188 + $0x18] sm:$0x7f]
        %v203 = vld [vmem:[%s188 + $0x20] sm:$0x7f]
        %v204 = vld [vmem:[%s188 + $0x28] sm:$0x7f]
        %v205 = vld [vmem:[%s188 + $0x30] sm:$0x7f]
        %v206 = vld [vmem:[%s188 + $0x38] sm:$0x7f]
        %v207 = vld [vmem:[%s1] sm:$0xff]
        %v209 = vrot.slane %v207, 7
        %v219 = vrot.slane %v199, 7
        %v220 = vrot.slane %v200, 7
        %v221 = vrot.slane %v201, 7
        %v222 = vrot.slane %v202, 7
        %v223 = vrot.slane %v203, 7
        %v224 = vrot.slane %v204, 7
        %v225 = vrot.slane %v205, 7
        %v226 = vrot.slane %v206, 7
        %vm235 = vcmask 1040384
        %v236 = vsel %vm235, %v191, %v209
        %v237 = vsel %vm235, %v192, %v209
        %v238 = vsel %vm235, %v193, %v209
        %v239 = vsel %vm235, %v194, %v209
        %v240 = vsel %vm235, %v195, %v209
        %v241 = vsel %vm235, %v196, %v209
        %v242 = vsel %vm235, %v197, %v209
        %v243 = vsel %vm235, %v198, %v209
        %v244 = vsel %vm235, %v209, %v219
        %v245 = vsel %vm235, %v209, %v220
        %v246 = vsel %vm235, %v209, %v221
        %v247 = vsel %vm235, %v209, %v222
        %v248 = vsel %vm235, %v209, %v223
        %v249 = vsel %vm235, %v209, %v224
        %v250 = vsel %vm235, %v209, %v225
        %v251 = vsel %vm235, %v209, %v226
        %252 = vst [vmem:[%s178] sm:$0xff] %v236
        %253 = vst [vmem:[%s178 + $0x8] sm:$0xff] %v244
        %254 = vst [vmem:[%s178 + $0x10] sm:$0xff] %v237
        %255 = vst [vmem:[%s178 + $0x18] sm:$0xff] %v245
        %256 = vst [vmem:[%s178 + $0x20] sm:$0xff] %v238
        %257 = vst [vmem:[%s178 + $0x28] sm:$0xff] %v246
        %258 = vst [vmem:[%s178 + $0x30] sm:$0xff] %v239
        %259 = vst [vmem:[%s178 + $0x38] sm:$0xff] %v247
        %260 = vst [vmem:[%s178 + $0x40] sm:$0xff] %v240
        %261 = vst [vmem:[%s178 + $0x48] sm:$0xff] %v248
        %262 = vst [vmem:[%s178 + $0x50] sm:$0xff] %v241
        %263 = vst [vmem:[%s178 + $0x58] sm:$0xff] %v249
        %264 = vst [vmem:[%s178 + $0x60] sm:$0xff] %v242
        %265 = vst [vmem:[%s178 + $0x68] sm:$0xff] %v250
        %266 = vst [vmem:[%s178 + $0x70] sm:$0xff] %v243
        %267 = vst [vmem:[%s178 + $0x78] sm:$0xff] %v251
        %s268 = sand.u32 %s98, 1
        %s269 = scalar_lea.sflag [#allocation3], %s268
        %s270 = sand.u32 %s98, 1
        %s271 = smul.addr %s270, 128
        %s272 = scalar_lea.vmem [#allocation2], %s271
        // Predicated region
        $region33: #{tpu_custom_call.1} parent=31 // pred_check
          %p273 = pneg %p108
        $region34: #{tpu_custom_call.1} parent=31 // pred_check_branch
          %275 = sbr.rel (%p273) target = $region36
        $region35: #{tpu_custom_call.1} parent=31 // pred_region
          %s276 = smul.u32 8, %s17
          %s278 = ssub.s32 2048, 2048
          %279 = vsyncadd %s269, %s278
          %s280 = smul.addr %s276, 2
          %s281 = smul.addr %s280, 128
          %s282 = scalar_lea.hbm %s3, %s281
          %s283 = sshll.u32 %s272, 4
          %s284 = int_to_ptr.vmem [resolvable:$true] %s283
          %289 = dma.vmem_to_hbm [thread:$0]  %s284, 2048, %s282, %s269, 128, 128, 8
        $region36: #{tpu_custom_call.1} parent=31 // pred_fallthru
          _
      $region32: #{tpu_custom_call.1} parent=5 // pred_fallthru
        _
      %p290 = scmp.le.s32.totalorder 2, %s12
      // Predicated region
      $region37: #{tpu_custom_call.1} parent=5 // pred_check
        %p291 = pneg %p290
      $region38: #{tpu_custom_call.1} parent=5 // pred_check_branch
        %293 = sbr.rel (%p291) target = $region40
      $region39: #{tpu_custom_call.1} parent=5 // pred_region
        %s294 = ssub.s32 %s12, 2
        // Predicated region
        $region41: #{tpu_custom_call.1} parent=39 // pred_check
          %p295 = pneg %p114
        $region42: #{tpu_custom_call.1} parent=39 // pred_check_branch
          %297 = sbr.rel (%p295) target = $region44
        $region43: #{tpu_custom_call.1} parent=39 // pred_region
          %s298 = sand.u32 %s99, 1
          %s299 = scalar_lea.sflag [#allocation3], %s298
          %s300 = sand.u32 %s99, 1
          %s301 = smul.addr %s300, 128
          %s302 = scalar_lea.vmem [#allocation2], %s301
          %303 = dma.done %s299, 2048
        $region44: #{tpu_custom_call.1} parent=39 // pred_fallthru
          _
      $region40: #{tpu_custom_call.1} parent=5 // pred_fallthru
        _
    $region6: #{tpu_custom_call.1} parent=1 // loop_footer
      %s16 = sadd.s32 1, %s12
    $region7: #{tpu_custom_call.1} parent=1 // loop_footer_branch
      %11 = sbr.rel target = $region3
    $region8: #{tpu_custom_call.1} parent=1 // loop_exit
      _
    %304 = vsyncpa [#allocation3], 1
    %s305 = scalar_lea.sflag [#allocation3], 1
    %306 = vsyncpa %s305, 1

</llo_original>
